<compile_context>
chip_gen: v7x
topology: tpu7x:2x2x1
jax: 0.10.0
libtpu: 0.0.40
codegen_flags: <defaults>
</compile_context>

<pallas_src>
import jax
import jax.numpy as jnp
from jax import lax
from jax.experimental import pallas as pl
from jax.experimental.pallas import tpu as pltpu


LN_EPS = 1e-5  # torch.nn.LayerNorm default


def residual_kernel(x_ref, w_ref, b_ref, gamma_ref, beta_ref, o_ref):
    # x_ref:     (tm, D)  f32 input tile
    # w_ref:     (D, D)   bf16 linear weight, y = x @ w + b
    # b_ref:     (1, D)   f32 linear bias
    # gamma_ref: (1, D)   f32 LayerNorm weight
    # beta_ref:  (1, D)   f32 LayerNorm bias
    x = x_ref[...].astype(jnp.float32)

    # Read the invariant row-vectors once per grid step (each used once below,
    # so no repeated broadcast materialization).
    bias = b_ref[...].astype(jnp.float32)
    gamma = gamma_ref[...].astype(jnp.float32)
    beta = beta_ref[...].astype(jnp.float32)

    # Sublayer: Linear(D, D).  bf16 x bf16 -> f32 accumulate on the MXU.
    y = jnp.dot(x.astype(jnp.bfloat16), w_ref[...],
                preferred_element_type=jnp.float32)

    # Dropout (eval mode) -> identity; residual add in f32.
    z = x + y + bias

    # LayerNorm over the last dim — one pass, two XLU reductions.
    d = z.shape[-1]
    inv_d = jnp.float32(1.0 / d)
    s1 = jnp.sum(z, axis=-1, keepdims=True)
    s2 = jnp.sum(z * z, axis=-1, keepdims=True)
    mean = s1 * inv_d
    var = jnp.maximum(s2 * inv_d - mean * mean, 0.0)
    inv_std = lax.rsqrt(var + LN_EPS)           # EUP slot
    out = (z - mean) * inv_std * gamma + beta

    o_ref[...] = out.astype(o_ref.dtype)


def _round_up(n, m):
    return ((n + m - 1) // m) * m


def residual_forward(x, w, b, gamma, beta, *, tm=256):
    """x: (B, S, D) float32.  Returns LayerNorm(x + Linear(x)), same shape."""
    B, S, D = x.shape
    rows = B * S

    # Big row tiles amortize per-grid-step overhead and feed the MXU; clamp
    # for tiny demo shapes (keep a multiple of 8 sublanes for f32).
    tm = min(tm, _round_up(rows, 8))
    grid_m = pl.cdiv(rows, tm)
    rows_pad = grid_m * tm

    x2 = x.reshape(rows, D).astype(jnp.float32)
    if rows_pad != rows:
        x2 = jnp.pad(x2, ((0, rows_pad - rows), (0, 0)))

    # bf16 weight: MXU-native throughput, half the VMEM / HBM bytes.
    w_bf = w.astype(jnp.bfloat16)
    b2 = b.reshape(1, D).astype(jnp.float32)
    g2 = gamma.reshape(1, D).astype(jnp.float32)
    be2 = beta.reshape(1, D).astype(jnp.float32)

    def run(single_buffer_invariants):
        inv_kwargs = (dict(pipeline_mode=pl.Buffered(1))
                      if single_buffer_invariants else {})
        grid_spec = pltpu.PrefetchScalarGridSpec(
            num_scalar_prefetch=0,
            grid=(grid_m,),
            in_specs=[
                pl.BlockSpec((tm, D), lambda i: (i, 0)),               # x tile
                pl.BlockSpec((D, D), lambda i: (0, 0), **inv_kwargs),  # weight
                pl.BlockSpec((1, D), lambda i: (0, 0), **inv_kwargs),  # bias
                pl.BlockSpec((1, D), lambda i: (0, 0), **inv_kwargs),  # gamma
                pl.BlockSpec((1, D), lambda i: (0, 0), **inv_kwargs),  # beta
            ],
            out_specs=pl.BlockSpec((tm, D), lambda i: (i, 0)),
        )
        return pl.pallas_call(
            residual_kernel,
            out_shape=jax.ShapeDtypeStruct((rows_pad, D), x.dtype),
            grid_spec=grid_spec,
            compiler_params=pltpu.CompilerParams(
                dimension_semantics=("parallel",),   # megacore-shard rows
                vmem_limit_bytes=64 * 1024 * 1024,
            ),
        )(x2, w_bf, b2, g2, be2)

    try:
        out = run(single_buffer_invariants=True)
    except Exception:
        # Fallback: default (double-buffered) invariant operands.
        out = run(single_buffer_invariants=False)

    return out[:rows].reshape(B, S, D)


def residual_reference(x, w, b, gamma, beta):
    y = jnp.einsum("bsd,de->bse", x, w) + b
    z = x + y
    mean = jnp.mean(z, axis=-1, keepdims=True)
    var = jnp.mean((z - mean) ** 2, axis=-1, keepdims=True)
    return (z - mean) * lax.rsqrt(var + LN_EPS) * gamma + beta


if __name__ == "__main__":
    key = jax.random.PRNGKey(0)
    kx, kw, kb = jax.random.split(key, 3)

    # D = 128 -> lane-dense (full 128-lane vregs / unmasked stores).
    batch, seq, dim = 2, 8, 128

    x = jax.random.normal(kx, (batch, seq, dim), dtype=jnp.float32)

    # Deterministic parameter init (PyTorch Linear-style uniform bound).
    bound = 1.0 / (dim ** 0.5)
    # Stored as (in, out) so the kernel computes x @ w + b (== x @ W_pt^T + b).
    w = jax.random.uniform(kw, (dim, dim), minval=-bound, maxval=bound,
                           dtype=jnp.float32)
    b = jax.random.uniform(kb, (dim,), minval=-bound, maxval=bound,
                           dtype=jnp.float32)
    # LayerNorm default init: weight = 1, bias = 0.
    gamma = jnp.ones((dim,), dtype=jnp.float32)
    beta = jnp.zeros((dim,), dtype=jnp.float32)

    out = residual_forward(x, w, b, gamma, beta)
    out = jax.block_until_ready(out)

    ref = residual_reference(x, w, b, gamma, beta)
    assert out.shape == (batch, seq, dim)
    # bf16 matmul inside the kernel vs. f32 reference -> loosened tolerance.
    assert jnp.max(jnp.abs(out - ref)) < 5e-2

    print("KERNEL_OK")
</pallas_src>

<mosaic_0001>
module attributes {stable_mosaic.version = 11 : i64} {
  func.func @residual_kernel(%arg0: i32, %arg1: memref<16x128xf32, #tpu.memory_space<vmem>>, %arg2: memref<128x128xbf16, #tpu.memory_space<vmem>>, %arg3: memref<1x128xf32, #tpu.memory_space<vmem>>, %arg4: memref<1x128xf32, #tpu.memory_space<vmem>>, %arg5: memref<1x128xf32, #tpu.memory_space<vmem>>, %arg6: memref<16x128xf32, #tpu.memory_space<vmem>>) attributes {dimension_semantics = [#tpu.dimension_semantics<parallel>], iteration_bounds = array<i64: 1>, scalar_prefetch = 0 : i64, scratch_operands = 0 : i64, tpu.core_type = #tpu.core_type<tc>, window_params = [{transform_indices = @transform_0, window_bounds = array<i64: 16, 128>}, {pipeline_mode = #tpu.pipeline_mode<synchronous>, transform_indices = @transform_1, window_bounds = array<i64: 128, 128>}, {pipeline_mode = #tpu.pipeline_mode<synchronous>, transform_indices = @transform_2, window_bounds = array<i64: 1, 128>}, {pipeline_mode = #tpu.pipeline_mode<synchronous>, transform_indices = @transform_3, window_bounds = array<i64: 1, 128>}, {pipeline_mode = #tpu.pipeline_mode<synchronous>, transform_indices = @transform_4, window_bounds = array<i64: 1, 128>}, {transform_indices = @transform_5, window_bounds = array<i64: 16, 128>}]} {
    %c0 = arith.constant 0 : index
    %c0_0 = arith.constant 0 : index
    %0 = vector.load %arg1[%c0, %c0_0] : memref<16x128xf32, #tpu.memory_space<vmem>>, vector<16x128xf32>
    %c0_1 = arith.constant 0 : index
    %c0_2 = arith.constant 0 : index
    %1 = vector.load %arg3[%c0_1, %c0_2] : memref<1x128xf32, #tpu.memory_space<vmem>>, vector<1x128xf32>
    %c0_3 = arith.constant 0 : index
    %c0_4 = arith.constant 0 : index
    %2 = vector.load %arg4[%c0_3, %c0_4] : memref<1x128xf32, #tpu.memory_space<vmem>>, vector<1x128xf32>
    %c0_5 = arith.constant 0 : index
    %c0_6 = arith.constant 0 : index
    %3 = vector.load %arg5[%c0_5, %c0_6] : memref<1x128xf32, #tpu.memory_space<vmem>>, vector<1x128xf32>
    %4 = arith.truncf %0 : vector<16x128xf32> to vector<16x128xbf16>
    %c0_7 = arith.constant 0 : index
    %c0_8 = arith.constant 0 : index
    %5 = vector.load %arg2[%c0_7, %c0_8] : memref<128x128xbf16, #tpu.memory_space<vmem>>, vector<128x128xbf16>
    %cst = arith.constant dense<0.000000e+00> : vector<16x128xf32>
    %6 = tpu.matmul %4, %5, %cst {dimension_numbers = #tpu.dot_dimension_numbers<[1], [0], [0], [1], [0, 0, 1, 1], [], []>} : vector<16x128xbf16>, vector<128x128xbf16>, vector<16x128xf32> -> vector<16x128xf32>
    %7 = arith.addf %0, %6 : vector<16x128xf32>
    %8 = vector.broadcast %1 : vector<1x128xf32> to vector<16x128xf32>
    %9 = arith.addf %7, %8 : vector<16x128xf32>
    %cst_9 = arith.constant dense<0.000000e+00> : vector<16xf32>
    %10 = vector.multi_reduction <add>, %9, %cst_9 [1] : vector<16x128xf32> to vector<16xf32>
    %11 = vector.shape_cast %10 : vector<16xf32> to vector<16x1xf32>
    %12 = arith.mulf %9, %9 : vector<16x128xf32>
    %cst_10 = arith.constant dense<0.000000e+00> : vector<16xf32>
    %13 = vector.multi_reduction <add>, %12, %cst_10 [1] : vector<16x128xf32> to vector<16xf32>
    %14 = vector.shape_cast %13 : vector<16xf32> to vector<16x1xf32>
    %cst_11 = arith.constant 7.812500e-03 : f32
    %15 = vector.broadcast %cst_11 : f32 to vector<16x1xf32>
    %16 = arith.mulf %11, %15 : vector<16x1xf32>
    %cst_12 = arith.constant 7.812500e-03 : f32
    %17 = vector.broadcast %cst_12 : f32 to vector<16x1xf32>
    %18 = arith.mulf %14, %17 : vector<16x1xf32>
    %19 = arith.mulf %16, %16 : vector<16x1xf32>
    %20 = arith.subf %18, %19 : vector<16x1xf32>
    %cst_13 = arith.constant 0.000000e+00 : f32
    %21 = vector.broadcast %cst_13 : f32 to vector<16x1xf32>
    %22 = arith.maximumf %20, %21 : vector<16x1xf32>
    %cst_14 = arith.constant 9.99999974E-6 : f32
    %23 = vector.broadcast %cst_14 : f32 to vector<16x1xf32>
    %24 = arith.addf %22, %23 : vector<16x1xf32>
    %25 = math.rsqrt %24 : vector<16x1xf32>
    %26 = vector.broadcast %16 : vector<16x1xf32> to vector<16x128xf32>
    %27 = arith.subf %9, %26 : vector<16x128xf32>
    %28 = vector.broadcast %25 : vector<16x1xf32> to vector<16x128xf32>
    %29 = arith.mulf %27, %28 : vector<16x128xf32>
    %30 = vector.broadcast %2 : vector<1x128xf32> to vector<16x128xf32>
    %31 = arith.mulf %29, %30 : vector<16x128xf32>
    %32 = vector.broadcast %3 : vector<1x128xf32> to vector<16x128xf32>
    %33 = arith.addf %31, %32 : vector<16x128xf32>
    %c0_15 = arith.constant 0 : index
    %c0_16 = arith.constant 0 : index
    %34 = vector.load %arg6[%c0_15, %c0_16] : memref<16x128xf32, #tpu.memory_space<vmem>>, vector<16x128xf32>
    tpu.vector_store %arg6[%c0_15, %c0_16], %33 {strides = array<i32>} : memref<16x128xf32, #tpu.memory_space<vmem>>, vector<16x128xf32>,
    return
  }
  func.func @transform_0(%arg0: i32) -> (i32, i32) {
    %c0_i32 = arith.constant 0 : i32
    %c0_i32_0 = arith.constant 0 : i32
    return %arg0, %c0_i32 : i32, i32
  }
  func.func @transform_1(%arg0: i32) -> (i32, i32) {
    %c0_i32 = arith.constant 0 : i32
    %c0_i32_0 = arith.constant 0 : i32
    %c0_i32_1 = arith.constant 0 : i32
    return %c0_i32, %c0_i32_0 : i32, i32
  }
  func.func @transform_2(%arg0: i32) -> (i32, i32) {
    %c0_i32 = arith.constant 0 : i32
    %c0_i32_0 = arith.constant 0 : i32
    %c0_i32_1 = arith.constant 0 : i32
    return %c0_i32, %c0_i32_0 : i32, i32
  }
  func.func @transform_3(%arg0: i32) -> (i32, i32) {
    %c0_i32 = arith.constant 0 : i32
    %c0_i32_0 = arith.constant 0 : i32
    %c0_i32_1 = arith.constant 0 : i32
    return %c0_i32, %c0_i32_0 : i32, i32
  }
  func.func @transform_4(%arg0: i32) -> (i32, i32) {
    %c0_i32 = arith.constant 0 : i32
    %c0_i32_0 = arith.constant 0 : i32
    %c0_i32_1 = arith.constant 0 : i32
    return %c0_i32, %c0_i32_0 : i32, i32
  }
  func.func @transform_5(%arg0: i32) -> (i32, i32) {
    %c0_i32 = arith.constant 0 : i32
    %c0_i32_0 = arith.constant 0 : i32
    return %arg0, %c0_i32 : i32, i32
  }
}

module attributes {stable_mosaic.version = 11 : i64} {
  func.func @residual_kernel(%arg0: i32, %arg1: memref<16x128xf32, #tpu.memory_space<vmem>>, %arg2: memref<128x128xbf16, #tpu.memory_space<vmem>>, %arg3: memref<1x128xf32, #tpu.memory_space<vmem>>, %arg4: memref<1x128xf32, #tpu.memory_space<vmem>>, %arg5: memref<1x128xf32, #tpu.memory_space<vmem>>, %arg6: memref<16x128xf32, #tpu.memory_space<vmem>>) attributes {dimension_semantics = [#tpu.dimension_semantics<parallel>], iteration_bounds = array<i64: 1>, scalar_prefetch = 0 : i64, scratch_operands = 0 : i64, tpu.core_type = #tpu.core_type<tc>, window_params = [{transform_indices = @transform_0, window_bounds = array<i64: 16, 128>}, {pipeline_mode = #tpu.pipeline_mode<synchronous>, transform_indices = @transform_1, window_bounds = array<i64: 128, 128>}, {pipeline_mode = #tpu.pipeline_mode<synchronous>, transform_indices = @transform_2, window_bounds = array<i64: 1, 128>}, {pipeline_mode = #tpu.pipeline_mode<synchronous>, transform_indices = @transform_3, window_bounds = array<i64: 1, 128>}, {pipeline_mode = #tpu.pipeline_mode<synchronous>, transform_indices = @transform_4, window_bounds = array<i64: 1, 128>}, {transform_indices = @transform_5, window_bounds = array<i64: 16, 128>}]} {
    %c0 = arith.constant 0 : index
    %c0_0 = arith.constant 0 : index
    %0 = vector.load %arg1[%c0, %c0_0] : memref<16x128xf32, #tpu.memory_space<vmem>>, vector<16x128xf32>
    %c0_1 = arith.constant 0 : index
    %c0_2 = arith.constant 0 : index
    %1 = vector.load %arg3[%c0_1, %c0_2] : memref<1x128xf32, #tpu.memory_space<vmem>>, vector<1x128xf32>
    %c0_3 = arith.constant 0 : index
    %c0_4 = arith.constant 0 : index
    %2 = vector.load %arg4[%c0_3, %c0_4] : memref<1x128xf32, #tpu.memory_space<vmem>>, vector<1x128xf32>
    %c0_5 = arith.constant 0 : index
    %c0_6 = arith.constant 0 : index
    %3 = vector.load %arg5[%c0_5, %c0_6] : memref<1x128xf32, #tpu.memory_space<vmem>>, vector<1x128xf32>
    %4 = arith.truncf %0 : vector<16x128xf32> to vector<16x128xbf16>
    %c0_7 = arith.constant 0 : index
    %c0_8 = arith.constant 0 : index
    %5 = vector.load %arg2[%c0_7, %c0_8] : memref<128x128xbf16, #tpu.memory_space<vmem>>, vector<128x128xbf16>
    %cst = arith.constant dense<0.000000e+00> : vector<16x128xf32>
    %6 = tpu.matmul %4, %5, %cst {dimension_numbers = #tpu.dot_dimension_numbers<[1], [0], [0], [1], [0, 0, 1, 1], [], []>} : vector<16x128xbf16>, vector<128x128xbf16>, vector<16x128xf32> -> vector<16x128xf32>
    %7 = arith.addf %0, %6 : vector<16x128xf32>
    %8 = vector.broadcast %1 : vector<1x128xf32> to vector<16x128xf32>
    %9 = arith.addf %7, %8 : vector<16x128xf32>
    %cst_9 = arith.constant dense<0.000000e+00> : vector<16xf32>
    %10 = vector.multi_reduction <add>, %9, %cst_9 [1] : vector<16x128xf32> to vector<16xf32>
    %11 = vector.shape_cast %10 : vector<16xf32> to vector<16x1xf32>
    %12 = arith.mulf %9, %9 : vector<16x128xf32>
    %cst_10 = arith.constant dense<0.000000e+00> : vector<16xf32>
    %13 = vector.multi_reduction <add>, %12, %cst_10 [1] : vector<16x128xf32> to vector<16xf32>
    %14 = vector.shape_cast %13 : vector<16xf32> to vector<16x1xf32>
    %cst_11 = arith.constant 7.812500e-03 : f32
    %15 = vector.broadcast %cst_11 : f32 to vector<16x1xf32>
    %16 = arith.mulf %11, %15 : vector<16x1xf32>
    %cst_12 = arith.constant 7.812500e-03 : f32
    %17 = vector.broadcast %cst_12 : f32 to vector<16x1xf32>
    %18 = arith.mulf %14, %17 : vector<16x1xf32>
    %19 = arith.mulf %16, %16 : vector<16x1xf32>
    %20 = arith.subf %18, %19 : vector<16x1xf32>
    %cst_13 = arith.constant 0.000000e+00 : f32
    %21 = vector.broadcast %cst_13 : f32 to vector<16x1xf32>
    %22 = arith.maximumf %20, %21 : vector<16x1xf32>
    %cst_14 = arith.constant 9.99999974E-6 : f32
    %23 = vector.broadcast %cst_14 : f32 to vector<16x1xf32>
    %24 = arith.addf %22, %23 : vector<16x1xf32>
    %25 = math.rsqrt %24 : vector<16x1xf32>
    %26 = vector.broadcast %16 : vector<16x1xf32> to vector<16x128xf32>
    %27 = arith.subf %9, %26 : vector<16x128xf32>
    %28 = vector.broadcast %25 : vector<16x1xf32> to vector<16x128xf32>
    %29 = arith.mulf %27, %28 : vector<16x128xf32>
    %30 = vector.broadcast %2 : vector<1x128xf32> to vector<16x128xf32>
    %31 = arith.mulf %29, %30 : vector<16x128xf32>
    %32 = vector.broadcast %3 : vector<1x128xf32> to vector<16x128xf32>
    %33 = arith.addf %31, %32 : vector<16x128xf32>
    %c0_15 = arith.constant 0 : index
    %c0_16 = arith.constant 0 : index
    %34 = vector.load %arg6[%c0_15, %c0_16] : memref<16x128xf32, #tpu.memory_space<vmem>>, vector<16x128xf32>
    tpu.vector_store %arg6[%c0_15, %c0_16], %33 {strides = array<i32>} : memref<16x128xf32, #tpu.memory_space<vmem>>, vector<16x128xf32>,
    return
  }
  func.func @transform_0(%arg0: i32) -> (i32, i32) {
    %c0_i32 = arith.constant 0 : i32
    %c0_i32_0 = arith.constant 0 : i32
    return %arg0, %c0_i32 : i32, i32
  }
  func.func @transform_1(%arg0: i32) -> (i32, i32) {
    %c0_i32 = arith.constant 0 : i32
    %c0_i32_0 = arith.constant 0 : i32
    %c0_i32_1 = arith.constant 0 : i32
    return %c0_i32, %c0_i32_0 : i32, i32
  }
  func.func @transform_2(%arg0: i32) -> (i32, i32) {
    %c0_i32 = arith.constant 0 : i32
    %c0_i32_0 = arith.constant 0 : i32
    %c0_i32_1 = arith.constant 0 : i32
    return %c0_i32, %c0_i32_0 : i32, i32
  }
  func.func @transform_3(%arg0: i32) -> (i32, i32) {
    %c0_i32 = arith.constant 0 : i32
    %c0_i32_0 = arith.constant 0 : i32
    %c0_i32_1 = arith.constant 0 : i32
    return %c0_i32, %c0_i32_0 : i32, i32
  }
  func.func @transform_4(%arg0: i32) -> (i32, i32) {
    %c0_i32 = arith.constant 0 : i32
    %c0_i32_0 = arith.constant 0 : i32
    %c0_i32_1 = arith.constant 0 : i32
    return %c0_i32, %c0_i32_0 : i32, i32
  }
  func.func @transform_5(%arg0: i32) -> (i32, i32) {
    %c0_i32 = arith.constant 0 : i32
    %c0_i32_0 = arith.constant 0 : i32
    return %arg0, %c0_i32 : i32, i32
  }
}

</mosaic_0001>

<llo_original>
// kernel: tpu_custom_call.1
$region0: #{tpu_custom_call.1}
  #allocation0 [shape = 'u32[]', space=smem, size = 0x4, offset = 0x4, fixed_abs, tag = 'smem constant byte address 0x4 - core index']
  #allocation1 [shape = 'u32[144,128]{1,0:T(1,128)}', space=vmem, size = 0x12000, scoped, tag = 'internal scratch']
  %s0 = inlined_call_operand.hbm [shape: f32[16,128], index: 0, kind: input, shape index: {}]
  %s1 = inlined_call_operand.hbm [shape: bf16[128,128], index: 1, kind: input, shape index: {}]
  %s2 = inlined_call_operand.hbm [shape: f32[1,128], index: 2, kind: input, shape index: {}]
  %s3 = inlined_call_operand.hbm [shape: f32[1,128], index: 3, kind: input, shape index: {}]
  %s4 = inlined_call_operand.hbm [shape: f32[1,128], index: 4, kind: input, shape index: {}]
  %s5 = inlined_call_operand.hbm [shape: f32[16,128], index: 5, kind: output, shape index: {}]
  %s6 = sld [smem:[#allocation0]]
  $region50: #{tpu_custom_call.1} parent=0
    _
  %s8 = ssub.s32 1, %s6
  %s9 = scalar_select 0, %s8, %s6
  $region1: #{tpu_custom_call.1} parent=0
    #allocation2 [shape = 'u8[8192]{0}', space=vmem, size = 0x2000, scoped, tag = 'input window, operand 0, single buffered']
    #allocation3 [shape = 's32[1]{0}', space=sflag, size = 0x4, scoped, tag = 'scoped memory for tpu_custom_call.1']
    #allocation4 [shape = 's32[1]{0}', space=sflag, size = 0x4, scoped, tag = 'scoped memory for tpu_custom_call.1']
    #allocation5 [shape = 'u8[32768]{0}', space=vmem, size = 0x8000, scoped, tag = 'input window, operand 1, single buffered']
    #allocation6 [shape = 's32[1]{0}', space=sflag, size = 0x4, scoped, tag = 'scoped memory for tpu_custom_call.1']
    #allocation7 [shape = 'u8[512]{0}', space=vmem, size = 0x400, scoped, tag = 'input window, operand 2, single buffered']
    #allocation8 [shape = 'u8[512]{0}', space=vmem, size = 0x400, scoped, tag = 'input window, operand 3, single buffered']
    #allocation9 [shape = 's32[1]{0}', space=sflag, size = 0x4, scoped, tag = 'scoped memory for tpu_custom_call.1']
    #allocation10 [shape = 'u8[512]{0}', space=vmem, size = 0x400, scoped, tag = 'input window, operand 4, single buffered']
    #allocation11 [shape = 'u8[8192]{0}', space=vmem, size = 0x2000, scoped, tag = 'output window, operand 0, single buffered']
    %10 = vsyncpa [#allocation3], 0
    %11 = vsyncpa [#allocation6], 0
    %12 = vsyncpa [#allocation9], 0
    %13 = vsyncpa [#allocation4], 0
    // Predicated region
    $region2: #{tpu_custom_call.1} parent=1 // pred_check
      _
    $region3: #{tpu_custom_call.1} parent=1 // pred_check_branch
      %15 = sbr.rel (0) target = $region5
    $region4: #{tpu_custom_call.1} parent=1 // pred_region
      %s17 = ssub.s32 256, 256
      %18 = vsyncadd [#allocation3], %s17
      %s19 = sshll.u32 [#allocation2], 4
      %s20 = int_to_ptr.vmem [resolvable:$true] %s19
      %25 = dma.hbm_to_vmem [thread:$0]  %s0, 256, %s20, [#allocation3], 128, 128, 8
    $region5: #{tpu_custom_call.1} parent=1 // pred_fallthru
      _
    // Predicated region
    $region6: #{tpu_custom_call.1} parent=1 // pred_check
      _
    $region7: #{tpu_custom_call.1} parent=1 // pred_check_branch
      %27 = sbr.rel (0) target = $region9
    $region8: #{tpu_custom_call.1} parent=1 // pred_region
      %s29 = ssub.s32 1024, 1024
      %30 = vsyncadd [#allocation6], %s29
      %s31 = sshll.u32 [#allocation5], 4
      %s32 = int_to_ptr.vmem [resolvable:$true] %s31
      %37 = dma.hbm_to_vmem [thread:$0]  %s1, 1024, %s32, [#allocation6], 64, 64, 4
    $region9: #{tpu_custom_call.1} parent=1 // pred_fallthru
      _
    // Predicated region
    $region10: #{tpu_custom_call.1} parent=1 // pred_check
      _
    $region11: #{tpu_custom_call.1} parent=1 // pred_check_branch
      %39 = sbr.rel (0) target = $region13
    $region12: #{tpu_custom_call.1} parent=1 // pred_region
      %s41 = ssub.s32 16, 16
      %42 = vsyncadd [#allocation6], %s41
      %s44 = sshll.u32 [#allocation7], 4
      %s45 = int_to_ptr.vmem [resolvable:$true] %s44
      %47 = dma.hbm_to_vmem [thread:$0]  %s2, 16, %s45, [#allocation6]
    $region13: #{tpu_custom_call.1} parent=1 // pred_fallthru
      _
    // Predicated region
    $region14: #{tpu_custom_call.1} parent=1 // pred_check
      _
    $region15: #{tpu_custom_call.1} parent=1 // pred_check_branch
      %49 = sbr.rel (0) target = $region17
    $region16: #{tpu_custom_call.1} parent=1 // pred_region
      %s51 = ssub.s32 16, 16
      %52 = vsyncadd [#allocation9], %s51
      %s54 = sshll.u32 [#allocation8], 4
      %s55 = int_to_ptr.vmem [resolvable:$true] %s54
      %57 = dma.hbm_to_vmem [thread:$0]  %s3, 16, %s55, [#allocation9]
    $region17: #{tpu_custom_call.1} parent=1 // pred_fallthru
      _
    // Predicated region
    $region18: #{tpu_custom_call.1} parent=1 // pred_check
      _
    $region19: #{tpu_custom_call.1} parent=1 // pred_check_branch
      %59 = sbr.rel (0) target = $region21
    $region20: #{tpu_custom_call.1} parent=1 // pred_region
      %s61 = ssub.s32 16, 16
      %62 = vsyncadd [#allocation9], %s61
      %s64 = sshll.u32 [#allocation10], 4
      %s65 = int_to_ptr.vmem [resolvable:$true] %s64
      %67 = dma.hbm_to_vmem [thread:$0]  %s4, 16, %s65, [#allocation9]
    $region21: #{tpu_custom_call.1} parent=1 // pred_fallthru
      _
    // Predicated region
    $region22: #{tpu_custom_call.1} parent=1 // pred_check
      _
    $region23: #{tpu_custom_call.1} parent=1 // pred_check_branch
      %69 = sbr.rel (0) target = $region25
    $region24: #{tpu_custom_call.1} parent=1 // pred_region
      %70 = dma.done [#allocation3], 256
    $region25: #{tpu_custom_call.1} parent=1 // pred_fallthru
      _
    // Predicated region
    $region26: #{tpu_custom_call.1} parent=1 // pred_check
      _
    $region27: #{tpu_custom_call.1} parent=1 // pred_check_branch
      %72 = sbr.rel (0) target = $region29
    $region28: #{tpu_custom_call.1} parent=1 // pred_region
      %73 = dma.done [#allocation6], 1024
    $region29: #{tpu_custom_call.1} parent=1 // pred_fallthru
      _
    // Predicated region
    $region30: #{tpu_custom_call.1} parent=1 // pred_check
      _
    $region31: #{tpu_custom_call.1} parent=1 // pred_check_branch
      %75 = sbr.rel (0) target = $region33
    $region32: #{tpu_custom_call.1} parent=1 // pred_region
      %76 = dma.done [#allocation6], 16
    $region33: #{tpu_custom_call.1} parent=1 // pred_fallthru
      _
    // Predicated region
    $region34: #{tpu_custom_call.1} parent=1 // pred_check
      _
    $region35: #{tpu_custom_call.1} parent=1 // pred_check_branch
      %78 = sbr.rel (0) target = $region37
    $region36: #{tpu_custom_call.1} parent=1 // pred_region
      %79 = dma.done [#allocation9], 16
    $region37: #{tpu_custom_call.1} parent=1 // pred_fallthru
      _
    // Predicated region
    $region38: #{tpu_custom_call.1} parent=1 // pred_check
      _
    $region39: #{tpu_custom_call.1} parent=1 // pred_check_branch
      %81 = sbr.rel (0) target = $region41
    $region40: #{tpu_custom_call.1} parent=1 // pred_region
      %82 = dma.done [#allocation9], 16
    $region41: #{tpu_custom_call.1} parent=1 // pred_fallthru
      _
    %v84 = vld [vmem:[#allocation2] sm:$0xff]
    %v85 = vld [vmem:[#allocation2 + $0x8] sm:$0xff]
    %v86 = vld [vmem:[#allocation7] sm:$0x1]
    %v87 = vld [vmem:[#allocation8] sm:$0x1]
    %v88 = vld [vmem:[#allocation10] sm:$0x1]
    %v89 = vpack.c.bf16 %v85, %v84
    %v90 = vld [vmem:[#allocation5] sm:$0xf]
    %v91 = vld [vmem:[#allocation5 + $0x4] sm:$0xf]
    %v92 = vld [vmem:[#allocation5 + $0x8] sm:$0xf]
    %v93 = vld [vmem:[#allocation5 + $0xc] sm:$0xf]
    %v94 = vld [vmem:[#allocation5 + $0x10] sm:$0xf]
    %v95 = vld [vmem:[#allocation5 + $0x14] sm:$0xf]
    %v96 = vld [vmem:[#allocation5 + $0x18] sm:$0xf]
    %v97 = vld [vmem:[#allocation5 + $0x1c] sm:$0xf]
    %v98 = vld [vmem:[#allocation5 + $0x20] sm:$0xf]
    %v99 = vld [vmem:[#allocation5 + $0x24] sm:$0xf]
    %v100 = vld [vmem:[#allocation5 + $0x28] sm:$0xf]
    %v101 = vld [vmem:[#allocation5 + $0x2c] sm:$0xf]
    %v102 = vld [vmem:[#allocation5 + $0x30] sm:$0xf]
    %v103 = vld [vmem:[#allocation5 + $0x34] sm:$0xf]
    %v104 = vld [vmem:[#allocation5 + $0x38] sm:$0xf]
    %v105 = vld [vmem:[#allocation5 + $0x3c] sm:$0xf]
    %v122 = vunpack.c.l.b16 %v90
    %v123 = vunpack.c.l.b16 %v91
    %v124 = vunpack.c.l.b16 %v92
    %v125 = vunpack.c.l.b16 %v93
    %v126 = vunpack.c.l.b16 %v94
    %v127 = vunpack.c.l.b16 %v95
    %v128 = vunpack.c.l.b16 %v96
    %v129 = vunpack.c.l.b16 %v97
    %v130 = vunpack.c.l.b16 %v98
    %v131 = vunpack.c.l.b16 %v99
    %v132 = vunpack.c.l.b16 %v100
    %v133 = vunpack.c.l.b16 %v101
    %v134 = vunpack.c.l.b16 %v102
    %v135 = vunpack.c.l.b16 %v103
    %v136 = vunpack.c.l.b16 %v104
    %v137 = vunpack.c.l.b16 %v105
    %v138 = vpack.c.b16 %v123, %v122
    %v139 = vpack.c.b16 %v125, %v124
    %v140 = vpack.c.b16 %v127, %v126
    %v141 = vpack.c.b16 %v129, %v128
    %v142 = vpack.c.b16 %v131, %v130
    %v143 = vpack.c.b16 %v133, %v132
    %v144 = vpack.c.b16 %v135, %v134
    %v145 = vpack.c.b16 %v137, %v136
    %154 = vmatprep.subr.bf16.mxu0 0
    %155 = vmatpush1.bf16.msra.mxu0 %v138
    %156 = vmatprep.subr.bf16.mxu0 0
    %157 = vmatpush1.bf16.msra.mxu0 %v139
    %158 = vmatprep.subr.bf16.mxu0 0
    %159 = vmatpush1.bf16.msra.mxu0 %v140
    %160 = vmatprep.subr.bf16.mxu0 0
    %161 = vmatpush1.bf16.msra.mxu0 %v141
    %162 = vmatprep.subr.bf16.mxu0 0
    %163 = vmatpush1.bf16.msra.mxu0 %v142
    %164 = vmatprep.subr.bf16.mxu0 0
    %165 = vmatpush1.bf16.msra.mxu0 %v143
    %166 = vmatprep.subr.bf16.mxu0 0
    %167 = vmatpush1.bf16.msra.mxu0 %v144
    %168 = vmatprep.subr.bf16.mxu0 0
    %169 = vmatpush1.bf16.msra.mxu0 %v145
    %170 = vmatprep.subr.bf16.mxu0 0
    %171 = vmatpush1.bf16.msra.mxu0 0
    %172 = vmatprep.subr.bf16.mxu0 0
    %173 = vmatpush1.bf16.msra.mxu0 0
    %174 = vmatprep.subr.bf16.mxu0 0
    %175 = vmatpush1.bf16.msra.mxu0 0
    %176 = vmatprep.subr.bf16.mxu0 0
    %177 = vmatpush1.bf16.msra.mxu0 0
    %178 = vmatprep.subr.bf16.mxu0 0
    %179 = vmatpush1.bf16.msra.mxu0 0
    %180 = vmatprep.subr.bf16.mxu0 0
    %181 = vmatpush1.bf16.msra.mxu0 0
    %182 = vmatprep.subr.bf16.mxu0 0
    %183 = vmatpush1.bf16.msra.mxu0 0
    %184 = vmatprep.subr.bf16.mxu0 0
    %185 = vmatpush1.bf16.msra.mxu0 0
    %186 = vmatprep.mubr.bf16.mxu0 0
    %187 = vmatmul.mubr.bf16.gmra.mrb[0].mxu0 %v89
    %v188 = vpop.f32.mrb[0].mxu0
    %v189 = vadd.f32 0.0, %v188
    %v190 = vpop.f32.mrb[0].mxu0
    %v191 = vpop.f32.mrb[0].mxu0
    %v192 = vadd.f32 0.0, %v191
    %v193 = vpop.f32.mrb[0].mxu0
    %194 = vdwg.mxu0
    %v195 = vadd.f32 %v84, %v189
    %v196 = vadd.f32 %v85, %v192
    %v198 = vlaneseq
    %v199 = vshrl.u32 %v198, 7
    %v200 = vsub.s32 0, %v199
    %v201 = vrot.slane %v86, %v200
    %v203 = vadd.f32 %v195, %v201
    %v204 = vadd.f32 %v196, %v201
    %205 = vadd.xlane.f32.xlu0 %v203
    %v206 = vpop.xlane.xlu0 %205
    %207 = vadd.xlane.f32.xlu0 %v204
    %v208 = vpop.xlane.xlu0 %207
    %v209 = vmul.f32 %v203, %v203
    %v210 = vmul.f32 %v204, %v204
    %211 = vadd.xlane.f32.xlu0 %v209
    %v212 = vpop.xlane.xlu0 %211
    %213 = vadd.xlane.f32.xlu0 %v210
    %v214 = vpop.xlane.xlu0 %213
    %v215 = vmul.f32 %v206, 0.0078125
    %v216 = vmul.f32 %v208, 0.0078125
    %v217 = vmul.f32 %v212, 0.0078125
    %v218 = vmul.f32 %v214, 0.0078125
    %v219 = vmul.f32 %v215, %v215
    %v220 = vmul.f32 %v216, %v216
    %v221 = vsub.f32 %v217, %v219
    %v222 = vsub.f32 %v218, %v220
    %v223 = vmax.f32 %v221, 0.0
    %v224 = vmax.f32 %v222, 0.0
    %v225 = vadd.f32 %v223, 1e-05
    %v226 = vadd.f32 %v224, 1e-05
    %v227 = vrsqrt.pop %v225
    %v228 = vrsqrt.pop %v226
    %v229 = vsub.f32 %v203, %v215
    %v230 = vsub.f32 %v204, %v216
    %v231 = vmul.f32 %v229, %v227
    %v232 = vmul.f32 %v230, %v228
    %v234 = vlaneseq
    %v235 = vshrl.u32 %v234, 7
    %v236 = vsub.s32 0, %v235
    %v237 = vrot.slane %v87, %v236
    %v239 = vmul.f32 %v231, %v237
    %v240 = vmul.f32 %v232, %v237
    %v242 = vlaneseq
    %v243 = vshrl.u32 %v242, 7
    %v244 = vsub.s32 0, %v243
    %v245 = vrot.slane %v88, %v244
    %v247 = vadd.f32 %v239, %v245
    %v248 = vadd.f32 %v240, %v245
    %249 = vst [vmem:[#allocation11] sm:$0xff] %v247
    %250 = vst [vmem:[#allocation11 + $0x8] sm:$0xff] %v248
    // Predicated region
    $region42: #{tpu_custom_call.1} parent=1 // pred_check
      _
    $region43: #{tpu_custom_call.1} parent=1 // pred_check_branch
      %252 = sbr.rel (0) target = $region45
    $region44: #{tpu_custom_call.1} parent=1 // pred_region
      %s254 = ssub.s32 256, 256
      %255 = vsyncadd [#allocation4], %s254
      %s256 = sshll.u32 [#allocation11], 4
      %s257 = int_to_ptr.vmem [resolvable:$true] %s256
      %262 = dma.vmem_to_hbm [thread:$0]  %s257, 256, %s5, [#allocation4], 128, 128, 8
    $region45: #{tpu_custom_call.1} parent=1 // pred_fallthru
      _
    // Predicated region
    $region46: #{tpu_custom_call.1} parent=1 // pred_check
      _
    $region47: #{tpu_custom_call.1} parent=1 // pred_check_branch
      %264 = sbr.rel (0) target = $region49
    $region48: #{tpu_custom_call.1} parent=1 // pred_region
      %265 = dma.done [#allocation4], 256
    $region49: #{tpu_custom_call.1} parent=1 // pred_fallthru
      _
    %266 = vsyncpa [#allocation3], 1
    %267 = vsyncpa [#allocation6], 1
    %268 = vsyncpa [#allocation9], 1
    %269 = vsyncpa [#allocation4], 1

// kernel: tpu_custom_call.1
$region0: #{tpu_custom_call.1}
  #allocation0 [shape = 'u32[]', space=smem, size = 0x4, offset = 0x4, fixed_abs, tag = 'smem constant byte address 0x4 - core index']
  #allocation1 [shape = 'u32[144,128]{1,0:T(1,128)}', space=vmem, size = 0x12000, scoped, tag = 'internal scratch']
  %s0 = inlined_call_operand.hbm [shape: f32[16,128], index: 0, kind: input, shape index: {}]
  %s1 = inlined_call_operand.hbm [shape: bf16[128,128], index: 1, kind: input, shape index: {}]
  %s2 = inlined_call_operand.hbm [shape: f32[1,128], index: 2, kind: input, shape index: {}]
  %s3 = inlined_call_operand.hbm [shape: f32[1,128], index: 3, kind: input, shape index: {}]
  %s4 = inlined_call_operand.hbm [shape: f32[1,128], index: 4, kind: input, shape index: {}]
  %s5 = inlined_call_operand.hbm [shape: f32[16,128], index: 5, kind: output, shape index: {}]
  %s6 = sld [smem:[#allocation0]]
  $region50: #{tpu_custom_call.1} parent=0
    _
  %s8 = ssub.s32 1, %s6
  %s9 = scalar_select 0, %s8, %s6
  $region1: #{tpu_custom_call.1} parent=0
    #allocation2 [shape = 'u8[8192]{0}', space=vmem, size = 0x2000, scoped, tag = 'input window, operand 0, single buffered']
    #allocation3 [shape = 's32[1]{0}', space=sflag, size = 0x4, scoped, tag = 'scoped memory for tpu_custom_call.1']
    #allocation4 [shape = 's32[1]{0}', space=sflag, size = 0x4, scoped, tag = 'scoped memory for tpu_custom_call.1']
    #allocation5 [shape = 'u8[32768]{0}', space=vmem, size = 0x8000, scoped, tag = 'input window, operand 1, single buffered']
    #allocation6 [shape = 's32[1]{0}', space=sflag, size = 0x4, scoped, tag = 'scoped memory for tpu_custom_call.1']
    #allocation7 [shape = 'u8[512]{0}', space=vmem, size = 0x400, scoped, tag = 'input window, operand 2, single buffered']
    #allocation8 [shape = 'u8[512]{0}', space=vmem, size = 0x400, scoped, tag = 'input window, operand 3, single buffered']
    #allocation9 [shape = 's32[1]{0}', space=sflag, size = 0x4, scoped, tag = 'scoped memory for tpu_custom_call.1']
    #allocation10 [shape = 'u8[512]{0}', space=vmem, size = 0x400, scoped, tag = 'input window, operand 4, single buffered']
    #allocation11 [shape = 'u8[8192]{0}', space=vmem, size = 0x2000, scoped, tag = 'output window, operand 0, single buffered']
    %10 = vsyncpa [#allocation3], 0
    %11 = vsyncpa [#allocation6], 0
    %12 = vsyncpa [#allocation9], 0
    %13 = vsyncpa [#allocation4], 0
    // Predicated region
    $region2: #{tpu_custom_call.1} parent=1 // pred_check
      _
    $region3: #{tpu_custom_call.1} parent=1 // pred_check_branch
      %15 = sbr.rel (0) target = $region5
    $region4: #{tpu_custom_call.1} parent=1 // pred_region
      %s17 = ssub.s32 256, 256
      %18 = vsyncadd [#allocation3], %s17
      %s19 = sshll.u32 [#allocation2], 4
      %s20 = int_to_ptr.vmem [resolvable:$true] %s19
      %25 = dma.hbm_to_vmem [thread:$0]  %s0, 256, %s20, [#allocation3], 128, 128, 8
    $region5: #{tpu_custom_call.1} parent=1 // pred_fallthru
      _
    // Predicated region
    $region6: #{tpu_custom_call.1} parent=1 // pred_check
      _
    $region7: #{tpu_custom_call.1} parent=1 // pred_check_branch
      %27 = sbr.rel (0) target = $region9
    $region8: #{tpu_custom_call.1} parent=1 // pred_region
      %s29 = ssub.s32 1024, 1024
      %30 = vsyncadd [#allocation6], %s29
      %s31 = sshll.u32 [#allocation5], 4
      %s32 = int_to_ptr.vmem [resolvable:$true] %s31
      %37 = dma.hbm_to_vmem [thread:$0]  %s1, 1024, %s32, [#allocation6], 64, 64, 4
    $region9: #{tpu_custom_call.1} parent=1 // pred_fallthru
      _
    // Predicated region
    $region10: #{tpu_custom_call.1} parent=1 // pred_check
      _
    $region11: #{tpu_custom_call.1} parent=1 // pred_check_branch
      %39 = sbr.rel (0) target = $region13
    $region12: #{tpu_custom_call.1} parent=1 // pred_region
      %s41 = ssub.s32 16, 16
      %42 = vsyncadd [#allocation6], %s41
      %s44 = sshll.u32 [#allocation7], 4
      %s45 = int_to_ptr.vmem [resolvable:$true] %s44
      %47 = dma.hbm_to_vmem [thread:$0]  %s2, 16, %s45, [#allocation6]
    $region13: #{tpu_custom_call.1} parent=1 // pred_fallthru
      _
    // Predicated region
    $region14: #{tpu_custom_call.1} parent=1 // pred_check
      _
    $region15: #{tpu_custom_call.1} parent=1 // pred_check_branch
      %49 = sbr.rel (0) target = $region17
    $region16: #{tpu_custom_call.1} parent=1 // pred_region
      %s51 = ssub.s32 16, 16
      %52 = vsyncadd [#allocation9], %s51
      %s54 = sshll.u32 [#allocation8], 4
      %s55 = int_to_ptr.vmem [resolvable:$true] %s54
      %57 = dma.hbm_to_vmem [thread:$0]  %s3, 16, %s55, [#allocation9]
    $region17: #{tpu_custom_call.1} parent=1 // pred_fallthru
      _
    // Predicated region
    $region18: #{tpu_custom_call.1} parent=1 // pred_check
      _
    $region19: #{tpu_custom_call.1} parent=1 // pred_check_branch
      %59 = sbr.rel (0) target = $region21
    $region20: #{tpu_custom_call.1} parent=1 // pred_region
      %s61 = ssub.s32 16, 16
      %62 = vsyncadd [#allocation9], %s61
      %s64 = sshll.u32 [#allocation10], 4
      %s65 = int_to_ptr.vmem [resolvable:$true] %s64
      %67 = dma.hbm_to_vmem [thread:$0]  %s4, 16, %s65, [#allocation9]
    $region21: #{tpu_custom_call.1} parent=1 // pred_fallthru
      _
    // Predicated region
    $region22: #{tpu_custom_call.1} parent=1 // pred_check
      _
    $region23: #{tpu_custom_call.1} parent=1 // pred_check_branch
      %69 = sbr.rel (0) target = $region25
    $region24: #{tpu_custom_call.1} parent=1 // pred_region
      %70 = dma.done [#allocation3], 256
    $region25: #{tpu_custom_call.1} parent=1 // pred_fallthru
      _
    // Predicated region
    $region26: #{tpu_custom_call.1} parent=1 // pred_check
      _
    $region27: #{tpu_custom_call.1} parent=1 // pred_check_branch
      %72 = sbr.rel (0) target = $region29
    $region28: #{tpu_custom_call.1} parent=1 // pred_region
      %73 = dma.done [#allocation6], 1024
    $region29: #{tpu_custom_call.1} parent=1 // pred_fallthru
      _
    // Predicated region
    $region30: #{tpu_custom_call.1} parent=1 // pred_check
      _
    $region31: #{tpu_custom_call.1} parent=1 // pred_check_branch
      %75 = sbr.rel (0) target = $region33
    $region32: #{tpu_custom_call.1} parent=1 // pred_region
      %76 = dma.done [#allocation6], 16
    $region33: #{tpu_custom_call.1} parent=1 // pred_fallthru
      _
    // Predicated region
    $region34: #{tpu_custom_call.1} parent=1 // pred_check
      _
    $region35: #{tpu_custom_call.1} parent=1 // pred_check_branch
      %78 = sbr.rel (0) target = $region37
    $region36: #{tpu_custom_call.1} parent=1 // pred_region
      %79 = dma.done [#allocation9], 16
    $region37: #{tpu_custom_call.1} parent=1 // pred_fallthru
      _
    // Predicated region
    $region38: #{tpu_custom_call.1} parent=1 // pred_check
      _
    $region39: #{tpu_custom_call.1} parent=1 // pred_check_branch
      %81 = sbr.rel (0) target = $region41
    $region40: #{tpu_custom_call.1} parent=1 // pred_region
      %82 = dma.done [#allocation9], 16
    $region41: #{tpu_custom_call.1} parent=1 // pred_fallthru
      _
    %v84 = vld [vmem:[#allocation2] sm:$0xff]
    %v85 = vld [vmem:[#allocation2 + $0x8] sm:$0xff]
    %v86 = vld [vmem:[#allocation7] sm:$0x1]
    %v87 = vld [vmem:[#allocation8] sm:$0x1]
    %v88 = vld [vmem:[#allocation10] sm:$0x1]
    %v89 = vpack.c.bf16 %v85, %v84
    %v90 = vld [vmem:[#allocation5] sm:$0xf]
    %v91 = vld [vmem:[#allocation5 + $0x4] sm:$0xf]
    %v92 = vld [vmem:[#allocation5 + $0x8] sm:$0xf]
    %v93 = vld [vmem:[#allocation5 + $0xc] sm:$0xf]
    %v94 = vld [vmem:[#allocation5 + $0x10] sm:$0xf]
    %v95 = vld [vmem:[#allocation5 + $0x14] sm:$0xf]
    %v96 = vld [vmem:[#allocation5 + $0x18] sm:$0xf]
    %v97 = vld [vmem:[#allocation5 + $0x1c] sm:$0xf]
    %v98 = vld [vmem:[#allocation5 + $0x20] sm:$0xf]
    %v99 = vld [vmem:[#allocation5 + $0x24] sm:$0xf]
    %v100 = vld [vmem:[#allocation5 + $0x28] sm:$0xf]
    %v101 = vld [vmem:[#allocation5 + $0x2c] sm:$0xf]
    %v102 = vld [vmem:[#allocation5 + $0x30] sm:$0xf]
    %v103 = vld [vmem:[#allocation5 + $0x34] sm:$0xf]
    %v104 = vld [vmem:[#allocation5 + $0x38] sm:$0xf]
    %v105 = vld [vmem:[#allocation5 + $0x3c] sm:$0xf]
    %v122 = vunpack.c.l.b16 %v90
    %v123 = vunpack.c.l.b16 %v91
    %v124 = vunpack.c.l.b16 %v92
    %v125 = vunpack.c.l.b16 %v93
    %v126 = vunpack.c.l.b16 %v94
    %v127 = vunpack.c.l.b16 %v95
    %v128 = vunpack.c.l.b16 %v96
    %v129 = vunpack.c.l.b16 %v97
    %v130 = vunpack.c.l.b16 %v98
    %v131 = vunpack.c.l.b16 %v99
    %v132 = vunpack.c.l.b16 %v100
    %v133 = vunpack.c.l.b16 %v101
    %v134 = vunpack.c.l.b16 %v102
    %v135 = vunpack.c.l.b16 %v103
    %v136 = vunpack.c.l.b16 %v104
    %v137 = vunpack.c.l.b16 %v105
    %v138 = vpack.c.b16 %v123, %v122
    %v139 = vpack.c.b16 %v125, %v124
    %v140 = vpack.c.b16 %v127, %v126
    %v141 = vpack.c.b16 %v129, %v128
    %v142 = vpack.c.b16 %v131, %v130
    %v143 = vpack.c.b16 %v133, %v132
    %v144 = vpack.c.b16 %v135, %v134
    %v145 = vpack.c.b16 %v137, %v136
    %154 = vmatprep.subr.bf16.mxu0 0
    %155 = vmatpush1.bf16.msra.mxu0 %v138
    %156 = vmatprep.subr.bf16.mxu0 0
    %157 = vmatpush1.bf16.msra.mxu0 %v139
    %158 = vmatprep.subr.bf16.mxu0 0
    %159 = vmatpush1.bf16.msra.mxu0 %v140
    %160 = vmatprep.subr.bf16.mxu0 0
    %161 = vmatpush1.bf16.msra.mxu0 %v141
    %162 = vmatprep.subr.bf16.mxu0 0
    %163 = vmatpush1.bf16.msra.mxu0 %v142
    %164 = vmatprep.subr.bf16.mxu0 0
    %165 = vmatpush1.bf16.msra.mxu0 %v143
    %166 = vmatprep.subr.bf16.mxu0 0
    %167 = vmatpush1.bf16.msra.mxu0 %v144
    %168 = vmatprep.subr.bf16.mxu0 0
    %169 = vmatpush1.bf16.msra.mxu0 %v145
    %170 = vmatprep.subr.bf16.mxu0 0
    %171 = vmatpush1.bf16.msra.mxu0 0
    %172 = vmatprep.subr.bf16.mxu0 0
    %173 = vmatpush1.bf16.msra.mxu0 0
    %174 = vmatprep.subr.bf16.mxu0 0
    %175 = vmatpush1.bf16.msra.mxu0 0
    %176 = vmatprep.subr.bf16.mxu0 0
    %177 = vmatpush1.bf16.msra.mxu0 0
    %178 = vmatprep.subr.bf16.mxu0 0
    %179 = vmatpush1.bf16.msra.mxu0 0
    %180 = vmatprep.subr.bf16.mxu0 0
    %181 = vmatpush1.bf16.msra.mxu0 0
    %182 = vmatprep.subr.bf16.mxu0 0
    %183 = vmatpush1.bf16.msra.mxu0 0
    %184 = vmatprep.subr.bf16.mxu0 0
    %185 = vmatpush1.bf16.msra.mxu0 0
    %186 = vmatprep.mubr.bf16.mxu0 0
    %187 = vmatmul.mubr.bf16.gmra.mrb[0].mxu0 %v89
    %v188 = vpop.f32.mrb[0].mxu0
    %v189 = vadd.f32 0.0, %v188
    %v190 = vpop.f32.mrb[0].mxu0
    %v191 = vpop.f32.mrb[0].mxu0
    %v192 = vadd.f32 0.0, %v191
    %v193 = vpop.f32.mrb[0].mxu0
    %194 = vdwg.mxu0
    %v195 = vadd.f32 %v84, %v189
    %v196 = vadd.f32 %v85, %v192
    %v198 = vlaneseq
    %v199 = vshrl.u32 %v198, 7
    %v200 = vsub.s32 0, %v199
    %v201 = vrot.slane %v86, %v200
    %v203 = vadd.f32 %v195, %v201
    %v204 = vadd.f32 %v196, %v201
    %205 = vadd.xlane.f32.xlu0 %v203
    %v206 = vpop.xlane.xlu0 %205
    %207 = vadd.xlane.f32.xlu0 %v204
    %v208 = vpop.xlane.xlu0 %207
    %v209 = vmul.f32 %v203, %v203
    %v210 = vmul.f32 %v204, %v204
    %211 = vadd.xlane.f32.xlu0 %v209
    %v212 = vpop.xlane.xlu0 %211
    %213 = vadd.xlane.f32.xlu0 %v210
    %v214 = vpop.xlane.xlu0 %213
    %v215 = vmul.f32 %v206, 0.0078125
    %v216 = vmul.f32 %v208, 0.0078125
    %v217 = vmul.f32 %v212, 0.0078125
    %v218 = vmul.f32 %v214, 0.0078125
    %v219 = vmul.f32 %v215, %v215
    %v220 = vmul.f32 %v216, %v216
    %v221 = vsub.f32 %v217, %v219
    %v222 = vsub.f32 %v218, %v220
    %v223 = vmax.f32 %v221, 0.0
    %v224 = vmax.f32 %v222, 0.0
    %v225 = vadd.f32 %v223, 1e-05
    %v226 = vadd.f32 %v224, 1e-05
    %v227 = vrsqrt.pop %v225
    %v228 = vrsqrt.pop %v226
    %v229 = vsub.f32 %v203, %v215
    %v230 = vsub.f32 %v204, %v216
    %v231 = vmul.f32 %v229, %v227
    %v232 = vmul.f32 %v230, %v228
    %v234 = vlaneseq
    %v235 = vshrl.u32 %v234, 7
    %v236 = vsub.s32 0, %v235
    %v237 = vrot.slane %v87, %v236
    %v239 = vmul.f32 %v231, %v237
    %v240 = vmul.f32 %v232, %v237
    %v242 = vlaneseq
    %v243 = vshrl.u32 %v242, 7
    %v244 = vsub.s32 0, %v243
    %v245 = vrot.slane %v88, %v244
    %v247 = vadd.f32 %v239, %v245
    %v248 = vadd.f32 %v240, %v245
    %249 = vst [vmem:[#allocation11] sm:$0xff] %v247
    %250 = vst [vmem:[#allocation11 + $0x8] sm:$0xff] %v248
    // Predicated region
    $region42: #{tpu_custom_call.1} parent=1 // pred_check
      _
    $region43: #{tpu_custom_call.1} parent=1 // pred_check_branch
      %252 = sbr.rel (0) target = $region45
    $region44: #{tpu_custom_call.1} parent=1 // pred_region
      %s254 = ssub.s32 256, 256
      %255 = vsyncadd [#allocation4], %s254
      %s256 = sshll.u32 [#allocation11], 4
      %s257 = int_to_ptr.vmem [resolvable:$true] %s256
      %262 = dma.vmem_to_hbm [thread:$0]  %s257, 256, %s5, [#allocation4], 128, 128, 8
    $region45: #{tpu_custom_call.1} parent=1 // pred_fallthru
      _
    // Predicated region
    $region46: #{tpu_custom_call.1} parent=1 // pred_check
      _
    $region47: #{tpu_custom_call.1} parent=1 // pred_check_branch
      %264 = sbr.rel (0) target = $region49
    $region48: #{tpu_custom_call.1} parent=1 // pred_region
      %265 = dma.done [#allocation4], 256
    $region49: #{tpu_custom_call.1} parent=1 // pred_fallthru
      _
    %266 = vsyncpa [#allocation3], 1
    %267 = vsyncpa [#allocation6], 1
    %268 = vsyncpa [#allocation9], 1
    %269 = vsyncpa [#allocation4], 1

</llo_original>
